<compile_context>
chip_gen: v6e
topology: v6e:2x2x1
jax: 0.10.0
libtpu: 0.0.40
codegen_flags: <defaults>
</compile_context>

<pallas_src>
import jax
import jax.numpy as jnp
from jax import lax
from jax.experimental import pallas as pl
from jax.experimental.pallas import tpu as pltpu


def _round_up(n, m):
    return ((n + m - 1) // m) * m


def pca_decoder_kernel(z_ref, ev_ref, mean_ref, o_ref):
    # One row-tile of: out = z @ eigenvectors + mean
    out = jnp.dot(
        z_ref[...],
        ev_ref[...],
        preferred_element_type=jnp.float32,
        precision=lax.Precision.HIGHEST,
    )
    o_ref[...] = (out + mean_ref[...]).astype(o_ref.dtype)


def pca_decoder_forward(z, eigenvectors, mean, *, block_rows=4096):
    """z: (bs, length, num_components) f32.
    eigenvectors: (num_components, out_features) f32.
    mean: (out_features,) f32.
    Returns (bs, length, out_features)."""
    bs, length, num_components = z.shape
    kc, out_features = eigenvectors.shape
    assert kc == num_components

    N = bs * length
    z2 = z.reshape(N, num_components)
    mean2 = mean.reshape(1, out_features)

    # Row tile: multiple of 8 (f32 sublanes), no larger than the (8-rounded)
    # row count.  No padding of z / slicing of out: grid = cdiv(N, TM) and
    # Pallas masks the partial final block.
    TM = min(block_rows, _round_up(N, 8))
    TM = max(8, (TM // 8) * 8)
    grid = (pl.cdiv(N, TM),)

    # VMEM budget with correct lane-padded accounting: both the (TM, K) z
    # block (K padded to 128 lanes) and the (TM, F) out block cost
    # TM * round_up(F_or_128, 128) * 4 bytes per buffer, double-buffered.
    f_pad = _round_up(out_features, 128)
    k_pad = _round_up(num_components, 128)
    vmem_est = (
        2 * TM * k_pad * 4                      # z, double-buffered
        + 2 * TM * f_pad * 4                    # out, double-buffered
        + 2 * _round_up(num_components, 8) * f_pad * 4   # eigenvectors
        + 2 * 8 * f_pad * 4                     # mean
    )
    compiler_kwargs = dict(dimension_semantics=("parallel",))
    if vmem_est > 12 * 1024 * 1024:
        # Larger-than-default tiles: raise the scoped VMEM limit with headroom
        # (stays well under the 64 MiB physical VMEM of v7x).
        compiler_kwargs["vmem_limit_bytes"] = min(
            vmem_est + (4 << 20), 48 << 20)

    cost = pl.CostEstimate(
        flops=2 * N * num_components * out_features,
        transcendentals=0,
        bytes_accessed=4 * (N * num_components
                            + num_components * out_features
                            + out_features
                            + N * out_features),
    )

    out = pl.pallas_call(
        pca_decoder_kernel,
        out_shape=jax.ShapeDtypeStruct((N, out_features), z.dtype),
        grid=grid,
        in_specs=[
            # streamed row tile of z
            pl.BlockSpec((TM, num_components), lambda i: (i, 0)),
            # eigenvectors / mean: constant block index -> VMEM-resident
            pl.BlockSpec((num_components, out_features), lambda i: (0, 0)),
            pl.BlockSpec((1, out_features), lambda i: (0, 0)),
        ],
        out_specs=pl.BlockSpec((TM, out_features), lambda i: (i, 0)),
        compiler_params=pltpu.CompilerParams(**compiler_kwargs),
        cost_estimate=cost,
    )(z2, eigenvectors, mean2)

    return out.reshape(bs, length, out_features)


def pca_decoder_ref(z, eigenvectors, mean):
    """Pure-JAX reference mirroring PCADecoder.forward (whiten=False)."""
    bs, length, dim1 = z.shape
    out = z.reshape(bs * length, dim1) @ eigenvectors + mean
    return out.reshape(bs, length, eigenvectors.shape[1])


if __name__ == "__main__":
    bs = 2
    length = 8
    num_components = 8
    out_features = 128   # lane-dense output width (>=128)

    key = jax.random.PRNGKey(0)
    kz, kev, km = jax.random.split(key, 3)
    z = jax.random.normal(kz, (bs, length, num_components), jnp.float32)
    # torch.rand-style init: uniform [0, 1)
    eigenvectors = jax.random.uniform(kev, (num_components, out_features), jnp.float32)
    # default module mean is zeros; use a nonzero mean here to exercise the add
    mean = jax.random.normal(km, (out_features,), jnp.float32) * 0.1

    out = pca_decoder_forward(z, eigenvectors, mean)
    jax.block_until_ready(out)

    ref = pca_decoder_ref(z, eigenvectors, mean)
    assert out.shape == (bs, length, out_features), out.shape
    assert jnp.allclose(out, ref, atol=1e-5, rtol=1e-5), "mismatch vs reference"

    print("KERNEL_OK")
</pallas_src>

<mosaic_0001>
module attributes {stable_mosaic.version = 11 : i64} {
  func.func @pca_decoder_kernel(%arg0: i32, %arg1: memref<16x8xf32, #tpu.memory_space<vmem>>, %arg2: memref<8x128xf32, #tpu.memory_space<vmem>>, %arg3: memref<1x128xf32, #tpu.memory_space<vmem>>, %arg4: memref<16x128xf32, #tpu.memory_space<vmem>>) attributes {dimension_semantics = [#tpu.dimension_semantics<parallel>], iteration_bounds = array<i64: 1>, scalar_prefetch = 0 : i64, scratch_operands = 0 : i64, tpu.core_type = #tpu.core_type<tc>, window_params = [{transform_indices = @transform_0, window_bounds = array<i64: 16, 8>}, {pipeline_mode = #tpu.pipeline_mode<synchronous>, transform_indices = @transform_1, window_bounds = array<i64: 8, 128>}, {pipeline_mode = #tpu.pipeline_mode<synchronous>, transform_indices = @transform_2, window_bounds = array<i64: 1, 128>}, {transform_indices = @transform_3, window_bounds = array<i64: 16, 128>}]} {
    %c0 = arith.constant 0 : index
    %c0_0 = arith.constant 0 : index
    %0 = vector.load %arg1[%c0, %c0_0] : memref<16x8xf32, #tpu.memory_space<vmem>>, vector<16x8xf32>
    %c0_1 = arith.constant 0 : index
    %c0_2 = arith.constant 0 : index
    %1 = vector.load %arg2[%c0_1, %c0_2] : memref<8x128xf32, #tpu.memory_space<vmem>>, vector<8x128xf32>
    %cst = arith.constant dense<0.000000e+00> : vector<16x128xf32>
    %2 = tpu.matmul %0, %1, %cst {dimension_numbers = #tpu.dot_dimension_numbers<[1], [0], [0], [1], [0, 0, 1, 1], [], []>, precision = #tpu.contract_precision<fp32>} : vector<16x8xf32>, vector<8x128xf32>, vector<16x128xf32> -> vector<16x128xf32>
    %c0_3 = arith.constant 0 : index
    %c0_4 = arith.constant 0 : index
    %3 = vector.load %arg3[%c0_3, %c0_4] : memref<1x128xf32, #tpu.memory_space<vmem>>, vector<1x128xf32>
    %4 = vector.broadcast %3 : vector<1x128xf32> to vector<16x128xf32>
    %5 = arith.addf %2, %4 : vector<16x128xf32>
    %c0_5 = arith.constant 0 : index
    %c0_6 = arith.constant 0 : index
    %6 = vector.load %arg4[%c0_5, %c0_6] : memref<16x128xf32, #tpu.memory_space<vmem>>, vector<16x128xf32>
    tpu.vector_store %arg4[%c0_5, %c0_6], %5 {strides = array<i32>} : memref<16x128xf32, #tpu.memory_space<vmem>>, vector<16x128xf32>,
    return
  }
  func.func @transform_0(%arg0: i32) -> (i32, i32) {
    %c0_i32 = arith.constant 0 : i32
    %c0_i32_0 = arith.constant 0 : i32
    return %arg0, %c0_i32 : i32, i32
  }
  func.func @transform_1(%arg0: i32) -> (i32, i32) {
    %c0_i32 = arith.constant 0 : i32
    %c0_i32_0 = arith.constant 0 : i32
    %c0_i32_1 = arith.constant 0 : i32
    return %c0_i32, %c0_i32_0 : i32, i32
  }
  func.func @transform_2(%arg0: i32) -> (i32, i32) {
    %c0_i32 = arith.constant 0 : i32
    %c0_i32_0 = arith.constant 0 : i32
    %c0_i32_1 = arith.constant 0 : i32
    return %c0_i32, %c0_i32_0 : i32, i32
  }
  func.func @transform_3(%arg0: i32) -> (i32, i32) {
    %c0_i32 = arith.constant 0 : i32
    %c0_i32_0 = arith.constant 0 : i32
    return %arg0, %c0_i32 : i32, i32
  }
}

</mosaic_0001>

<llo_original>
// kernel: tpu_custom_call.1
$region0: #{tpu_custom_call.1}
  #allocation0 [shape = 'u32[]', space=smem, size = 0x4, offset = 0x4, fixed_abs, tag = 'smem constant byte address 0x4 - core index']
  #allocation1 [shape = 'u32[144,128]{1,0:T(1,128)}', space=vmem, size = 0x12000, scoped, tag = 'internal scratch']
  %s0 = inlined_call_operand.vmem [shape: f32[16,8], index: 0, kind: input, shape index: {}]
  %s1 = inlined_call_operand.vmem [shape: f32[8,128], index: 1, kind: input, shape index: {}]
  %s2 = inlined_call_operand.vmem [shape: f32[1,128], index: 2, kind: input, shape index: {}]
  %s3 = inlined_call_operand.hbm [shape: f32[16,128], index: 3, kind: output, shape index: {}]
  %s4 = sld [smem:[#allocation0]]
  $region22: #{tpu_custom_call.1} parent=0
    _
  %s6 = ssub.s32 1, %s4
  %s7 = scalar_select 0, %s6, %s4
  $region1: #{tpu_custom_call.1} parent=0
    #allocation2 [shape = 'u8[8192]{0}', space=vmem, size = 0x2000, scoped, tag = 'output window, operand 0, single buffered']
    #allocation3 [shape = 's32[1]{0}', space=sflag, size = 0x4, scoped, tag = 'scoped memory for tpu_custom_call.1']
    %8 = vsyncpa [#allocation3], 0
    // Predicated region
    $region2: #{tpu_custom_call.1} parent=1 // pred_check
      _
    $region3: #{tpu_custom_call.1} parent=1 // pred_check_branch
      %10 = sbr.rel (0) target = $region5
    $region4: #{tpu_custom_call.1} parent=1 // pred_region
      _
    $region5: #{tpu_custom_call.1} parent=1 // pred_fallthru
      _
    // Predicated region
    $region6: #{tpu_custom_call.1} parent=1 // pred_check
      _
    $region7: #{tpu_custom_call.1} parent=1 // pred_check_branch
      %12 = sbr.rel (0) target = $region9
    $region8: #{tpu_custom_call.1} parent=1 // pred_region
      _
    $region9: #{tpu_custom_call.1} parent=1 // pred_fallthru
      _
    // Predicated region
    $region10: #{tpu_custom_call.1} parent=1 // pred_check
      _
    $region11: #{tpu_custom_call.1} parent=1 // pred_check_branch
      %14 = sbr.rel (0) target = $region13
    $region12: #{tpu_custom_call.1} parent=1 // pred_region
      _
    $region13: #{tpu_custom_call.1} parent=1 // pred_fallthru
      _
    %v15 = vld [vmem:[%s0] sm:$0xff]
    %v16 = vld [vmem:[%s0 + $0x8] sm:$0xff]
    %v17 = vld [vmem:[%s1] sm:$0xff]
    %v18 = vld [vmem:[%s2] sm:$0x1]
    %v20 = vlaneseq
    %v21 = vshrl.u32 %v20, 7
    %v22 = vsub.s32 0, %v21
    %v23 = vrot.slane %v18, %v22
    %vm25 = vcmask 64512
    %v27 = vsel %vm25, %v15, 0
    %v30 = vsel %vm25, %v16, 0
    %32 = vmatprep.subr.mxu0 0.0
    %33 = vmatpush1.msra.mxu0 0.0
    %34 = vmatprep.subr.mxu0 0.0
    %35 = vmatpush1.msra.mxu0 0.0
    %36 = vmatprep.subr.mxu0 0.0
    %37 = vmatpush1.msra.mxu0 0.0
    %38 = vmatprep.subr.mxu0 0.0
    %39 = vmatpush1.msra.mxu0 0.0
    %40 = vmatprep.subr.mxu0 0.0
    %41 = vmatpush1.msra.mxu0 0.0
    %42 = vmatprep.subr.mxu0 0.0
    %43 = vmatpush1.msra.mxu0 0.0
    %44 = vmatprep.subr.mxu0 0.0
    %45 = vmatpush1.msra.mxu0 0.0
    %46 = vmatprep.subr.mxu0 0.0
    %47 = vmatpush1.msra.mxu0 0.0
    %48 = vmatprep.subr.mxu0 0.0
    %49 = vmatpush1.msra.mxu0 0.0
    %50 = vmatprep.subr.mxu0 0.0
    %51 = vmatpush1.msra.mxu0 0.0
    %52 = vmatprep.subr.mxu0 0.0
    %53 = vmatpush1.msra.mxu0 0.0
    %54 = vmatprep.subr.mxu0 0.0
    %55 = vmatpush1.msra.mxu0 0.0
    %56 = vmatprep.subr.mxu0 0.0
    %57 = vmatpush1.msra.mxu0 0.0
    %58 = vmatprep.subr.mxu0 0.0
    %59 = vmatpush1.msra.mxu0 0.0
    %60 = vmatprep.subr.mxu0 0.0
    %61 = vmatpush1.msra.mxu0 0.0
    %62 = vmatprep.subr.mxu0 0.0
    %v63 = vand.u32 %v17, 4294901760
    %64 = vmatpush1.msra.mxu0 %v63
    %65 = vmatprep.subr.mxu0 0.0
    %66 = vmatpush2.msra.mxu0 0.0
    %67 = vmatprep.subr.mxu0 0.0
    %68 = vmatpush2.msra.mxu0 0.0
    %69 = vmatprep.subr.mxu0 0.0
    %70 = vmatpush2.msra.mxu0 0.0
    %71 = vmatprep.subr.mxu0 0.0
    %72 = vmatpush2.msra.mxu0 0.0
    %73 = vmatprep.subr.mxu0 0.0
    %74 = vmatpush2.msra.mxu0 0.0
    %75 = vmatprep.subr.mxu0 0.0
    %76 = vmatpush2.msra.mxu0 0.0
    %77 = vmatprep.subr.mxu0 0.0
    %78 = vmatpush2.msra.mxu0 0.0
    %79 = vmatprep.subr.mxu0 0.0
    %80 = vmatpush2.msra.mxu0 0.0
    %81 = vmatprep.subr.mxu0 0.0
    %82 = vmatpush2.msra.mxu0 0.0
    %83 = vmatprep.subr.mxu0 0.0
    %84 = vmatpush2.msra.mxu0 0.0
    %85 = vmatprep.subr.mxu0 0.0
    %86 = vmatpush2.msra.mxu0 0.0
    %87 = vmatprep.subr.mxu0 0.0
    %88 = vmatpush2.msra.mxu0 0.0
    %89 = vmatprep.subr.mxu0 0.0
    %90 = vmatpush2.msra.mxu0 0.0
    %91 = vmatprep.subr.mxu0 0.0
    %92 = vmatpush2.msra.mxu0 0.0
    %93 = vmatprep.subr.mxu0 0.0
    %94 = vmatpush2.msra.mxu0 0.0
    %95 = vmatprep.subr.mxu0 0.0
    %96 = vmatpush2.msra.mxu0 0.0
    %97 = vmatprep.mubr.f32.mxu0 0.0
    %v98 = vand.u32 %v27, 4294901760
    %v99 = vsub.f32 %v27, %v98
    %v100 = vand.u32 %v99, 4294901760
    %v101 = vsub.f32 %v99, %v100
    %v102 = vand.u32 %v101, 4294901760
    %103 = vmatmul.mubr.f32.gmra.mxu0 %v102
    %v104 = vpop.f32.mrf.mxu0
    %v105 = vadd.f32 %v23, %v104
    %v106 = vpop.f32.mrf.mxu0
    %107 = vmatprep.mubr.f32.mxu0 0.0
    %v108 = vand.u32 %v30, 4294901760
    %v109 = vsub.f32 %v30, %v108
    %v110 = vand.u32 %v109, 4294901760
    %v111 = vsub.f32 %v109, %v110
    %v112 = vand.u32 %v111, 4294901760
    %113 = vmatmul.mubr.f32.gmra.mxu0 %v112
    %v114 = vpop.f32.mrf.mxu0
    %v115 = vadd.f32 %v23, %v114
    %v116 = vpop.f32.mrf.mxu0
    %117 = vdwg.mxu0
    %118 = vmatprep.subr.mxu0 0.0
    %119 = vmatpush1.msra.mxu0 0.0
    %120 = vmatprep.subr.mxu0 0.0
    %121 = vmatpush1.msra.mxu0 0.0
    %122 = vmatprep.subr.mxu0 0.0
    %123 = vmatpush1.msra.mxu0 0.0
    %124 = vmatprep.subr.mxu0 0.0
    %125 = vmatpush1.msra.mxu0 0.0
    %126 = vmatprep.subr.mxu0 0.0
    %127 = vmatpush1.msra.mxu0 0.0
    %128 = vmatprep.subr.mxu0 0.0
    %129 = vmatpush1.msra.mxu0 0.0
    %130 = vmatprep.subr.mxu0 0.0
    %131 = vmatpush1.msra.mxu0 0.0
    %132 = vmatprep.subr.mxu0 0.0
    %133 = vmatpush1.msra.mxu0 0.0
    %134 = vmatprep.subr.mxu0 0.0
    %135 = vmatpush1.msra.mxu0 0.0
    %136 = vmatprep.subr.mxu0 0.0
    %137 = vmatpush1.msra.mxu0 0.0
    %138 = vmatprep.subr.mxu0 0.0
    %139 = vmatpush1.msra.mxu0 0.0
    %140 = vmatprep.subr.mxu0 0.0
    %141 = vmatpush1.msra.mxu0 0.0
    %142 = vmatprep.subr.mxu0 0.0
    %143 = vmatpush1.msra.mxu0 0.0
    %144 = vmatprep.subr.mxu0 0.0
    %145 = vmatpush1.msra.mxu0 0.0
    %146 = vmatprep.subr.mxu0 0.0
    %147 = vmatpush1.msra.mxu0 0.0
    %148 = vmatprep.subr.mxu0 0.0
    %v149 = vand.u32 %v17, 4294901760
    %v150 = vsub.f32 %v17, %v149
    %v151 = vand.u32 %v150, 4294901760
    %v152 = vsub.f32 %v150, %v151
    %v153 = vand.u32 %v152, 4294901760
    %154 = vmatpush1.msra.mxu0 %v153
    %155 = vmatprep.subr.mxu0 0.0
    %156 = vmatpush2.msra.mxu0 0.0
    %157 = vmatprep.subr.mxu0 0.0
    %158 = vmatpush2.msra.mxu0 0.0
    %159 = vmatprep.subr.mxu0 0.0
    %160 = vmatpush2.msra.mxu0 0.0
    %161 = vmatprep.subr.mxu0 0.0
    %162 = vmatpush2.msra.mxu0 0.0
    %163 = vmatprep.subr.mxu0 0.0
    %164 = vmatpush2.msra.mxu0 0.0
    %165 = vmatprep.subr.mxu0 0.0
    %166 = vmatpush2.msra.mxu0 0.0
    %167 = vmatprep.subr.mxu0 0.0
    %168 = vmatpush2.msra.mxu0 0.0
    %169 = vmatprep.subr.mxu0 0.0
    %170 = vmatpush2.msra.mxu0 0.0
    %171 = vmatprep.subr.mxu0 0.0
    %172 = vmatpush2.msra.mxu0 0.0
    %173 = vmatprep.subr.mxu0 0.0
    %174 = vmatpush2.msra.mxu0 0.0
    %175 = vmatprep.subr.mxu0 0.0
    %176 = vmatpush2.msra.mxu0 0.0
    %177 = vmatprep.subr.mxu0 0.0
    %178 = vmatpush2.msra.mxu0 0.0
    %179 = vmatprep.subr.mxu0 0.0
    %180 = vmatpush2.msra.mxu0 0.0
    %181 = vmatprep.subr.mxu0 0.0
    %182 = vmatpush2.msra.mxu0 0.0
    %183 = vmatprep.subr.mxu0 0.0
    %184 = vmatpush2.msra.mxu0 0.0
    %185 = vmatprep.subr.mxu0 0.0
    %186 = vmatpush2.msra.mxu0 0.0
    %187 = vmatprep.mubr.f32.mxu0 0.0
    %v188 = vand.u32 %v27, 4294901760
    %189 = vmatmul.mubr.f32.gmra.mxu0 %v188
    %v190 = vpop.f32.mrf.mxu0
    %v191 = vadd.f32 %v105, %v190
    %v192 = vpop.f32.mrf.mxu0
    %193 = vmatprep.mubr.f32.mxu0 0.0
    %v194 = vand.u32 %v30, 4294901760
    %195 = vmatmul.mubr.f32.gmra.mxu0 %v194
    %v196 = vpop.f32.mrf.mxu0
    %v197 = vadd.f32 %v115, %v196
    %v198 = vpop.f32.mrf.mxu0
    %199 = vdwg.mxu0
    %200 = vmatprep.subr.mxu0 0.0
    %201 = vmatpush1.msra.mxu0 0.0
    %202 = vmatprep.subr.mxu0 0.0
    %203 = vmatpush1.msra.mxu0 0.0
    %204 = vmatprep.subr.mxu0 0.0
    %205 = vmatpush1.msra.mxu0 0.0
    %206 = vmatprep.subr.mxu0 0.0
    %207 = vmatpush1.msra.mxu0 0.0
    %208 = vmatprep.subr.mxu0 0.0
    %209 = vmatpush1.msra.mxu0 0.0
    %210 = vmatprep.subr.mxu0 0.0
    %211 = vmatpush1.msra.mxu0 0.0
    %212 = vmatprep.subr.mxu0 0.0
    %213 = vmatpush1.msra.mxu0 0.0
    %214 = vmatprep.subr.mxu0 0.0
    %215 = vmatpush1.msra.mxu0 0.0
    %216 = vmatprep.subr.mxu0 0.0
    %217 = vmatpush1.msra.mxu0 0.0
    %218 = vmatprep.subr.mxu0 0.0
    %219 = vmatpush1.msra.mxu0 0.0
    %220 = vmatprep.subr.mxu0 0.0
    %221 = vmatpush1.msra.mxu0 0.0
    %222 = vmatprep.subr.mxu0 0.0
    %223 = vmatpush1.msra.mxu0 0.0
    %224 = vmatprep.subr.mxu0 0.0
    %225 = vmatpush1.msra.mxu0 0.0
    %226 = vmatprep.subr.mxu0 0.0
    %227 = vmatpush1.msra.mxu0 0.0
    %228 = vmatprep.subr.mxu0 0.0
    %229 = vmatpush1.msra.mxu0 0.0
    %230 = vmatprep.subr.mxu0 0.0
    %v231 = vand.u32 %v17, 4294901760
    %v232 = vsub.f32 %v17, %v231
    %233 = vmatpush1.msra.mxu0 %v232
    %234 = vmatprep.subr.mxu0 0.0
    %235 = vmatpush2.msra.mxu0 0.0
    %236 = vmatprep.subr.mxu0 0.0
    %237 = vmatpush2.msra.mxu0 0.0
    %238 = vmatprep.subr.mxu0 0.0
    %239 = vmatpush2.msra.mxu0 0.0
    %240 = vmatprep.subr.mxu0 0.0
    %241 = vmatpush2.msra.mxu0 0.0
    %242 = vmatprep.subr.mxu0 0.0
    %243 = vmatpush2.msra.mxu0 0.0
    %244 = vmatprep.subr.mxu0 0.0
    %245 = vmatpush2.msra.mxu0 0.0
    %246 = vmatprep.subr.mxu0 0.0
    %247 = vmatpush2.msra.mxu0 0.0
    %248 = vmatprep.subr.mxu0 0.0
    %249 = vmatpush2.msra.mxu0 0.0
    %250 = vmatprep.subr.mxu0 0.0
    %251 = vmatpush2.msra.mxu0 0.0
    %252 = vmatprep.subr.mxu0 0.0
    %253 = vmatpush2.msra.mxu0 0.0
    %254 = vmatprep.subr.mxu0 0.0
    %255 = vmatpush2.msra.mxu0 0.0
    %256 = vmatprep.subr.mxu0 0.0
    %257 = vmatpush2.msra.mxu0 0.0
    %258 = vmatprep.subr.mxu0 0.0
    %259 = vmatpush2.msra.mxu0 0.0
    %260 = vmatprep.subr.mxu0 0.0
    %261 = vmatpush2.msra.mxu0 0.0
    %262 = vmatprep.subr.mxu0 0.0
    %263 = vmatpush2.msra.mxu0 0.0
    %264 = vmatprep.subr.mxu0 0.0
    %265 = vmatpush2.msra.mxu0 0.0
    %266 = vmatprep.mubr.f32.mxu0 0.0
    %v267 = vand.u32 %v27, 4294901760
    %v268 = vsub.f32 %v27, %v267
    %269 = vmatmul.mubr.f32.gmra.mxu0 %v268
    %v270 = vpop.f32.mrf.mxu0
    %v271 = vadd.f32 %v191, %v270
    %v272 = vpop.f32.mrf.mxu0
    %273 = vmatprep.mubr.f32.mxu0 0.0
    %v274 = vand.u32 %v30, 4294901760
    %v275 = vsub.f32 %v30, %v274
    %276 = vmatmul.mubr.f32.gmra.mxu0 %v275
    %v277 = vpop.f32.mrf.mxu0
    %v278 = vadd.f32 %v197, %v277
    %v279 = vpop.f32.mrf.mxu0
    %280 = vdwg.mxu0
    %281 = vmatprep.subr.mxu0 0.0
    %282 = vmatpush1.msra.mxu0 0.0
    %283 = vmatprep.subr.mxu0 0.0
    %284 = vmatpush1.msra.mxu0 0.0
    %285 = vmatprep.subr.mxu0 0.0
    %286 = vmatpush1.msra.mxu0 0.0
    %287 = vmatprep.subr.mxu0 0.0
    %288 = vmatpush1.msra.mxu0 0.0
    %289 = vmatprep.subr.mxu0 0.0
    %290 = vmatpush1.msra.mxu0 0.0
    %291 = vmatprep.subr.mxu0 0.0
    %292 = vmatpush1.msra.mxu0 0.0
    %293 = vmatprep.subr.mxu0 0.0
    %294 = vmatpush1.msra.mxu0 0.0
    %295 = vmatprep.subr.mxu0 0.0
    %296 = vmatpush1.msra.mxu0 0.0
    %297 = vmatprep.subr.mxu0 0.0
    %298 = vmatpush1.msra.mxu0 0.0
    %299 = vmatprep.subr.mxu0 0.0
    %300 = vmatpush1.msra.mxu0 0.0
    %301 = vmatprep.subr.mxu0 0.0
    %302 = vmatpush1.msra.mxu0 0.0
    %303 = vmatprep.subr.mxu0 0.0
    %304 = vmatpush1.msra.mxu0 0.0
    %305 = vmatprep.subr.mxu0 0.0
    %306 = vmatpush1.msra.mxu0 0.0
    %307 = vmatprep.subr.mxu0 0.0
    %308 = vmatpush1.msra.mxu0 0.0
    %309 = vmatprep.subr.mxu0 0.0
    %310 = vmatpush1.msra.mxu0 0.0
    %311 = vmatprep.subr.mxu0 0.0
    %v312 = vand.u32 %v17, 4294901760
    %313 = vmatpush1.msra.mxu0 %v312
    %314 = vmatprep.subr.mxu0 0.0
    %315 = vmatpush2.msra.mxu0 0.0
    %316 = vmatprep.subr.mxu0 0.0
    %317 = vmatpush2.msra.mxu0 0.0
    %318 = vmatprep.subr.mxu0 0.0
    %319 = vmatpush2.msra.mxu0 0.0
    %320 = vmatprep.subr.mxu0 0.0
    %321 = vmatpush2.msra.mxu0 0.0
    %322 = vmatprep.subr.mxu0 0.0
    %323 = vmatpush2.msra.mxu0 0.0
    %324 = vmatprep.subr.mxu0 0.0
    %325 = vmatpush2.msra.mxu0 0.0
    %326 = vmatprep.subr.mxu0 0.0
    %327 = vmatpush2.msra.mxu0 0.0
    %328 = vmatprep.subr.mxu0 0.0
    %329 = vmatpush2.msra.mxu0 0.0
    %330 = vmatprep.subr.mxu0 0.0
    %331 = vmatpush2.msra.mxu0 0.0
    %332 = vmatprep.subr.mxu0 0.0
    %333 = vmatpush2.msra.mxu0 0.0
    %334 = vmatprep.subr.mxu0 0.0
    %335 = vmatpush2.msra.mxu0 0.0
    %336 = vmatprep.subr.mxu0 0.0
    %337 = vmatpush2.msra.mxu0 0.0
    %338 = vmatprep.subr.mxu0 0.0
    %339 = vmatpush2.msra.mxu0 0.0
    %340 = vmatprep.subr.mxu0 0.0
    %341 = vmatpush2.msra.mxu0 0.0
    %342 = vmatprep.subr.mxu0 0.0
    %343 = vmatpush2.msra.mxu0 0.0
    %344 = vmatprep.subr.mxu0 0.0
    %345 = vmatpush2.msra.mxu0 0.0
    %346 = vmatprep.mubr.f32.mxu0 0.0
    %v347 = vand.u32 %v27, 4294901760
    %v348 = vsub.f32 %v27, %v347
    %v349 = vand.u32 %v348, 4294901760
    %350 = vmatmul.mubr.f32.gmra.mxu0 %v349
    %v351 = vpop.f32.mrf.mxu0
    %v352 = vadd.f32 %v271, %v351
    %v353 = vpop.f32.mrf.mxu0
    %354 = vmatprep.mubr.f32.mxu0 0.0
    %v355 = vand.u32 %v30, 4294901760
    %v356 = vsub.f32 %v30, %v355
    %v357 = vand.u32 %v356, 4294901760
    %358 = vmatmul.mubr.f32.gmra.mxu0 %v357
    %v359 = vpop.f32.mrf.mxu0
    %v360 = vadd.f32 %v278, %v359
    %v361 = vpop.f32.mrf.mxu0
    %362 = vdwg.mxu0
    %363 = vmatprep.subr.mxu0 0.0
    %364 = vmatpush1.msra.mxu0 0.0
    %365 = vmatprep.subr.mxu0 0.0
    %366 = vmatpush1.msra.mxu0 0.0
    %367 = vmatprep.subr.mxu0 0.0
    %368 = vmatpush1.msra.mxu0 0.0
    %369 = vmatprep.subr.mxu0 0.0
    %370 = vmatpush1.msra.mxu0 0.0
    %371 = vmatprep.subr.mxu0 0.0
    %372 = vmatpush1.msra.mxu0 0.0
    %373 = vmatprep.subr.mxu0 0.0
    %374 = vmatpush1.msra.mxu0 0.0
    %375 = vmatprep.subr.mxu0 0.0
    %376 = vmatpush1.msra.mxu0 0.0
    %377 = vmatprep.subr.mxu0 0.0
    %378 = vmatpush1.msra.mxu0 0.0
    %379 = vmatprep.subr.mxu0 0.0
    %380 = vmatpush1.msra.mxu0 0.0
    %381 = vmatprep.subr.mxu0 0.0
    %382 = vmatpush1.msra.mxu0 0.0
    %383 = vmatprep.subr.mxu0 0.0
    %384 = vmatpush1.msra.mxu0 0.0
    %385 = vmatprep.subr.mxu0 0.0
    %386 = vmatpush1.msra.mxu0 0.0
    %387 = vmatprep.subr.mxu0 0.0
    %388 = vmatpush1.msra.mxu0 0.0
    %389 = vmatprep.subr.mxu0 0.0
    %390 = vmatpush1.msra.mxu0 0.0
    %391 = vmatprep.subr.mxu0 0.0
    %392 = vmatpush1.msra.mxu0 0.0
    %393 = vmatprep.subr.mxu0 0.0
    %v394 = vand.u32 %v17, 4294901760
    %v395 = vsub.f32 %v17, %v394
    %v396 = vand.u32 %v395, 4294901760
    %397 = vmatpush1.msra.mxu0 %v396
    %398 = vmatprep.subr.mxu0 0.0
    %399 = vmatpush2.msra.mxu0 0.0
    %400 = vmatprep.subr.mxu0 0.0
    %401 = vmatpush2.msra.mxu0 0.0
    %402 = vmatprep.subr.mxu0 0.0
    %403 = vmatpush2.msra.mxu0 0.0
    %404 = vmatprep.subr.mxu0 0.0
    %405 = vmatpush2.msra.mxu0 0.0
    %406 = vmatprep.subr.mxu0 0.0
    %407 = vmatpush2.msra.mxu0 0.0
    %408 = vmatprep.subr.mxu0 0.0
    %409 = vmatpush2.msra.mxu0 0.0
    %410 = vmatprep.subr.mxu0 0.0
    %411 = vmatpush2.msra.mxu0 0.0
    %412 = vmatprep.subr.mxu0 0.0
    %413 = vmatpush2.msra.mxu0 0.0
    %414 = vmatprep.subr.mxu0 0.0
    %415 = vmatpush2.msra.mxu0 0.0
    %416 = vmatprep.subr.mxu0 0.0
    %417 = vmatpush2.msra.mxu0 0.0
    %418 = vmatprep.subr.mxu0 0.0
    %419 = vmatpush2.msra.mxu0 0.0
    %420 = vmatprep.subr.mxu0 0.0
    %421 = vmatpush2.msra.mxu0 0.0
    %422 = vmatprep.subr.mxu0 0.0
    %423 = vmatpush2.msra.mxu0 0.0
    %424 = vmatprep.subr.mxu0 0.0
    %425 = vmatpush2.msra.mxu0 0.0
    %426 = vmatprep.subr.mxu0 0.0
    %427 = vmatpush2.msra.mxu0 0.0
    %428 = vmatprep.subr.mxu0 0.0
    %429 = vmatpush2.msra.mxu0 0.0
    %430 = vmatprep.mubr.f32.mxu0 0.0
    %v431 = vand.u32 %v27, 4294901760
    %432 = vmatmul.mubr.f32.gmra.mxu0 %v431
    %v433 = vpop.f32.mrf.mxu0
    %v434 = vadd.f32 %v352, %v433
    %v435 = vpop.f32.mrf.mxu0
    %436 = vmatprep.mubr.f32.mxu0 0.0
    %v437 = vand.u32 %v30, 4294901760
    %438 = vmatmul.mubr.f32.gmra.mxu0 %v437
    %v439 = vpop.f32.mrf.mxu0
    %v440 = vadd.f32 %v360, %v439
    %v441 = vpop.f32.mrf.mxu0
    %442 = vdwg.mxu0
    %443 = vmatprep.subr.mxu0 0.0
    %444 = vmatpush1.msra.mxu0 0.0
    %445 = vmatprep.subr.mxu0 0.0
    %446 = vmatpush1.msra.mxu0 0.0
    %447 = vmatprep.subr.mxu0 0.0
    %448 = vmatpush1.msra.mxu0 0.0
    %449 = vmatprep.subr.mxu0 0.0
    %450 = vmatpush1.msra.mxu0 0.0
    %451 = vmatprep.subr.mxu0 0.0
    %452 = vmatpush1.msra.mxu0 0.0
    %453 = vmatprep.subr.mxu0 0.0
    %454 = vmatpush1.msra.mxu0 0.0
    %455 = vmatprep.subr.mxu0 0.0
    %456 = vmatpush1.msra.mxu0 0.0
    %457 = vmatprep.subr.mxu0 0.0
    %458 = vmatpush1.msra.mxu0 0.0
    %459 = vmatprep.subr.mxu0 0.0
    %460 = vmatpush1.msra.mxu0 0.0
    %461 = vmatprep.subr.mxu0 0.0
    %462 = vmatpush1.msra.mxu0 0.0
    %463 = vmatprep.subr.mxu0 0.0
    %464 = vmatpush1.msra.mxu0 0.0
    %465 = vmatprep.subr.mxu0 0.0
    %466 = vmatpush1.msra.mxu0 0.0
    %467 = vmatprep.subr.mxu0 0.0
    %468 = vmatpush1.msra.mxu0 0.0
    %469 = vmatprep.subr.mxu0 0.0
    %470 = vmatpush1.msra.mxu0 0.0
    %471 = vmatprep.subr.mxu0 0.0
    %472 = vmatpush1.msra.mxu0 0.0
    %473 = vmatprep.subr.mxu0 0.0
    %v474 = vand.u32 %v17, 4294901760
    %475 = vmatpush1.msra.mxu0 %v474
    %476 = vmatprep.subr.mxu0 0.0
    %477 = vmatpush2.msra.mxu0 0.0
    %478 = vmatprep.subr.mxu0 0.0
    %479 = vmatpush2.msra.mxu0 0.0
    %480 = vmatprep.subr.mxu0 0.0
    %481 = vmatpush2.msra.mxu0 0.0
    %482 = vmatprep.subr.mxu0 0.0
    %483 = vmatpush2.msra.mxu0 0.0
    %484 = vmatprep.subr.mxu0 0.0
    %485 = vmatpush2.msra.mxu0 0.0
    %486 = vmatprep.subr.mxu0 0.0
    %487 = vmatpush2.msra.mxu0 0.0
    %488 = vmatprep.subr.mxu0 0.0
    %489 = vmatpush2.msra.mxu0 0.0
    %490 = vmatprep.subr.mxu0 0.0
    %491 = vmatpush2.msra.mxu0 0.0
    %492 = vmatprep.subr.mxu0 0.0
    %493 = vmatpush2.msra.mxu0 0.0
    %494 = vmatprep.subr.mxu0 0.0
    %495 = vmatpush2.msra.mxu0 0.0
    %496 = vmatprep.subr.mxu0 0.0
    %497 = vmatpush2.msra.mxu0 0.0
    %498 = vmatprep.subr.mxu0 0.0
    %499 = vmatpush2.msra.mxu0 0.0
    %500 = vmatprep.subr.mxu0 0.0
    %501 = vmatpush2.msra.mxu0 0.0
    %502 = vmatprep.subr.mxu0 0.0
    %503 = vmatpush2.msra.mxu0 0.0
    %504 = vmatprep.subr.mxu0 0.0
    %505 = vmatpush2.msra.mxu0 0.0
    %506 = vmatprep.subr.mxu0 0.0
    %507 = vmatpush2.msra.mxu0 0.0
    %508 = vmatprep.mubr.f32.mxu0 0.0
    %v509 = vand.u32 %v27, 4294901760
    %510 = vmatmul.mubr.f32.gmra.mxu0 %v509
    %v511 = vpop.f32.mrf.mxu0
    %v512 = vadd.f32 %v434, %v511
    %v513 = vpop.f32.mrf.mxu0
    %514 = vmatprep.mubr.f32.mxu0 0.0
    %v515 = vand.u32 %v30, 4294901760
    %516 = vmatmul.mubr.f32.gmra.mxu0 %v515
    %v517 = vpop.f32.mrf.mxu0
    %v518 = vadd.f32 %v440, %v517
    %v519 = vpop.f32.mrf.mxu0
    %520 = vdwg.mxu0
    %521 = vst [vmem:[#allocation2] sm:$0xff] %v512
    %522 = vst [vmem:[#allocation2 + $0x8] sm:$0xff] %v518
    // Predicated region
    $region14: #{tpu_custom_call.1} parent=1 // pred_check
      _
    $region15: #{tpu_custom_call.1} parent=1 // pred_check_branch
      %524 = sbr.rel (0) target = $region17
    $region16: #{tpu_custom_call.1} parent=1 // pred_region
      %s526 = ssub.s32 256, 256
      %527 = vsyncadd [#allocation3], %s526
      %s528 = sshll.u32 [#allocation2], 4
      %s529 = int_to_ptr.vmem [resolvable:$true] %s528
      %534 = dma.vmem_to_hbm [thread:$0]  %s529, 256, %s3, [#allocation3], 128, 128, 8
    $region17: #{tpu_custom_call.1} parent=1 // pred_fallthru
      _
    // Predicated region
    $region18: #{tpu_custom_call.1} parent=1 // pred_check
      _
    $region19: #{tpu_custom_call.1} parent=1 // pred_check_branch
      %536 = sbr.rel (0) target = $region21
    $region20: #{tpu_custom_call.1} parent=1 // pred_region
      %537 = dma.done [#allocation3], 256
    $region21: #{tpu_custom_call.1} parent=1 // pred_fallthru
      _
    %538 = vsyncpa [#allocation3], 1

</llo_original>
